<compile_context>
chip_gen: v7x
topology: tpu7x:2x2x1
jax: 0.10.0
libtpu: 0.0.40
codegen_flags: <defaults>
</compile_context>

<pallas_src>
import math

import jax
import jax.numpy as jnp
from jax.experimental import pallas as pl
from jax.experimental.pallas import tpu as pltpu


def _cdiv(a, b):
    return -(-a // b)


def _constantmax_quan_kernel(beta_ref, gamma_ref, x_ref, o_ref):
    # beta/gamma live in SMEM, shape (1,).  Quantize / dequantize / reciprocal
    # are pure scalar work done once per grid step on the scalar unit.
    beta = beta_ref[0]
    gamma = gamma_ref[0]
    beta_q = jnp.round(beta * 100.0) / 100.0
    gamma_q = jnp.round(gamma * 10.0) / 10.0
    inv_gamma = 1.0 / gamma_q  # exact scalar reciprocal

    # Compute in f32 vregs regardless of HBM dtype (v5e has no bf16 VPU/EUP).
    x = x_ref[...].astype(jnp.float32)
    y = jnp.exp(x - beta_q) * inv_gamma
    o_ref[...] = y.astype(o_ref.dtype)


def _chip_config():
    """Return (target_block_bytes, num_tensorcores) for the local TPU."""
    kind = ""
    try:
        kind = jax.devices()[0].device_kind.lower()
    except Exception:
        pass
    if "v5" in kind:
        # v5e: 16 MiB default scoped VMEM -> keep ~2 MiB blocks (~8 MiB buffers).
        return 2 * 1024 * 1024, 1
    if "v6" in kind:
        # v6e: 32 MiB default scoped VMEM -> ~4 MiB blocks (~16 MiB buffers).
        return 4 * 1024 * 1024, 1
    if "7" in kind:
        # v7x: 2 TensorCores/chip; 4 MiB blocks fit the 32 MiB default limit.
        return 4 * 1024 * 1024, 2
    # Unknown generation: conservative block, assume possibly multi-core.
    return 2 * 1024 * 1024, 2


def _pick_lane_width(total, min_rows):
    """Largest lane-dense width (multiple of 128) dividing `total`, preferring
    one that leaves at least `min_rows` rows so the grid can be split."""
    best = None
    for c in (4096, 2048, 1024, 512, 256, 128):
        if total % c == 0:
            if best is None:
                best = c
            if total // c >= min_rows:
                return c
    return best  # None if total is not a multiple of 128


def _run_kernel(x, beta_f32, gamma_f32):
    """x: any shape whose element count is a multiple of 128. Returns (rows, C)."""
    dtype = x.dtype
    total = math.prod(x.shape)
    itemsize = jnp.dtype(dtype).itemsize
    block_bytes, num_tc = _chip_config()
    sub = max(8, 32 // itemsize)  # sublane granule: 8 f32 / 16 bf16 / 32 int8-fp8

    C = _pick_lane_width(total, num_tc * sub)
    rows = total // C
    x2 = x.reshape(rows, C)  # zero-copy bitcast: C divides total

    if rows <= sub:
        # Tiny tensor: one block equal to the full array (always a legal spec).
        tm, g = rows, 1
    else:
        target_tm = max(sub, (block_bytes // (C * itemsize)) // sub * sub)
        # Step count rounded to a multiple of the TC count so both v7x cores
        # stream HBM; ragged final block is masked by Pallas (no padding).
        g = num_tc * _cdiv(rows, num_tc * target_tm)
        tm = _cdiv(_cdiv(rows, g), sub) * sub
        g = _cdiv(rows, tm)

    return pl.pallas_call(
        _constantmax_quan_kernel,
        out_shape=jax.ShapeDtypeStruct((rows, C), dtype),
        grid=(g,),
        in_specs=[
            pl.BlockSpec(memory_space=pltpu.SMEM),       # beta  (scalar)
            pl.BlockSpec(memory_space=pltpu.SMEM),       # gamma (scalar)
            pl.BlockSpec((tm, C), lambda i: (i, 0)),     # x tile (lane-dense)
        ],
        out_specs=pl.BlockSpec((tm, C), lambda i: (i, 0)),
        compiler_params=pltpu.CompilerParams(
            dimension_semantics=("parallel",)),
        cost_estimate=pl.CostEstimate(
            flops=2 * total,
            transcendentals=total,
            bytes_accessed=2 * total * itemsize),
    )(beta_f32, gamma_f32, x2)


def constantmax_quan(x, beta, gamma):
    """x: any-rank float array. beta, gamma: shape (1,) float parameters."""
    orig_shape = x.shape
    dtype = x.dtype
    total = math.prod(orig_shape)
    if total == 0:
        return x

    beta_f32 = beta.astype(jnp.float32)
    gamma_f32 = gamma.astype(jnp.float32)

    if total % 128 == 0:
        out = _run_kernel(x, beta_f32, gamma_f32)
        return out.reshape(orig_shape)

    # Rare non-lane-aligned element count: run the kernel on the 128-aligned
    # prefix and finish the (<128-element) tail with a tiny fused XLA op
    # instead of padding / re-copying the whole array.
    prefix = (total // 128) * 128
    flat = x.reshape(-1)
    beta_q = jnp.round(beta_f32[0] * 100.0) / 100.0
    gamma_q = jnp.round(gamma_f32[0] * 10.0) / 10.0
    parts = []
    if prefix:
        parts.append(_run_kernel(flat[:prefix], beta_f32, gamma_f32).reshape(-1))
    tail = (jnp.exp(flat[prefix:].astype(jnp.float32) - beta_q) / gamma_q).astype(dtype)
    parts.append(tail)
    out_flat = jnp.concatenate(parts) if len(parts) > 1 else parts[0]
    return out_flat.reshape(orig_shape)


def constantmax_quan_ref(x, beta, gamma):
    beta_q = jnp.round(beta * 100.0) / 100.0
    gamma_q = jnp.round(gamma * 10.0) / 10.0
    return jnp.exp(x - beta_q) / gamma_q


if __name__ == "__main__":
    key = jax.random.PRNGKey(0)

    # attention-score-like input: (batch=2, heads=4, seq=16, seq=16)
    x = jax.random.normal(key, (2, 4, 16, 16), dtype=jnp.float32)

    # deterministic parameter init (config.constantmax_initial_{gamma,beta})
    constantmax_initial_gamma = 100.0
    constantmax_initial_beta = 0.0
    gamma = jnp.array([constantmax_initial_gamma], dtype=jnp.float32)
    beta = jnp.array([constantmax_initial_beta], dtype=jnp.float32)

    y = constantmax_quan(x, beta, gamma)
    y = jax.block_until_ready(y)

    y_ref = constantmax_quan_ref(x, beta[0], gamma[0])
    assert y.shape == x.shape and y.dtype == x.dtype
    assert jnp.allclose(y, y_ref, rtol=1e-6, atol=1e-6), "mismatch vs reference"

    print("KERNEL_OK")
</pallas_src>

<mosaic_0001>
module attributes {stable_mosaic.version = 11 : i64} {
  func.func @_constantmax_quan_kernel(%arg0: i32, %arg1: memref<1xf32, #tpu.memory_space<smem>>, %arg2: memref<1xf32, #tpu.memory_space<smem>>, %arg3: memref<8x128xf32, #tpu.memory_space<vmem>>, %arg4: memref<8x128xf32, #tpu.memory_space<vmem>>) attributes {dimension_semantics = [#tpu.dimension_semantics<parallel>], iteration_bounds = array<i64: 2>, scalar_prefetch = 0 : i64, scratch_operands = 0 : i64, tpu.core_type = #tpu.core_type<tc>, window_params = [{transform_indices = @transform_0, window_bounds = array<i64: 1>}, {transform_indices = @transform_1, window_bounds = array<i64: 1>}, {transform_indices = @transform_2, window_bounds = array<i64: 8, 128>}, {transform_indices = @transform_3, window_bounds = array<i64: 8, 128>}]} {
    %c0 = arith.constant 0 : index
    %0 = memref.load %arg1[%c0] : memref<1xf32, #tpu.memory_space<smem>>
    %c0_0 = arith.constant 0 : index
    %1 = memref.load %arg2[%c0_0] : memref<1xf32, #tpu.memory_space<smem>>
    %cst = arith.constant 1.000000e+02 : f32
    %2 = arith.mulf %0, %cst : f32
    %3 = math.roundeven %2 : f32
    %cst_1 = arith.constant 1.000000e+02 : f32
    %4 = arith.divf %3, %cst_1 : f32
    %cst_2 = arith.constant 1.000000e+01 : f32
    %5 = arith.mulf %1, %cst_2 : f32
    %6 = math.roundeven %5 : f32
    %cst_3 = arith.constant 1.000000e+01 : f32
    %7 = arith.divf %6, %cst_3 : f32
    %cst_4 = arith.constant 1.000000e+00 : f32
    %8 = arith.divf %cst_4, %7 : f32
    %c0_5 = arith.constant 0 : index
    %c0_6 = arith.constant 0 : index
    %9 = vector.load %arg3[%c0_5, %c0_6] : memref<8x128xf32, #tpu.memory_space<vmem>>, vector<8x128xf32>
    %10 = vector.broadcast %4 : f32 to vector<8x128xf32>
    %11 = arith.subf %9, %10 : vector<8x128xf32>
    %12 = math.exp %11 : vector<8x128xf32>
    %13 = vector.broadcast %8 : f32 to vector<8x128xf32>
    %14 = arith.mulf %12, %13 : vector<8x128xf32>
    %c0_7 = arith.constant 0 : index
    %c0_8 = arith.constant 0 : index
    %15 = vector.load %arg4[%c0_7, %c0_8] : memref<8x128xf32, #tpu.memory_space<vmem>>, vector<8x128xf32>
    tpu.vector_store %arg4[%c0_7, %c0_8], %14 {strides = array<i32>} : memref<8x128xf32, #tpu.memory_space<vmem>>, vector<8x128xf32>,
    return
  }
  func.func @transform_0(%arg0: i32) -> i32 {
    %c0_i32 = arith.constant 0 : i32
    %c0_i32_0 = arith.constant 0 : i32
    return %c0_i32 : i32
  }
  func.func @transform_1(%arg0: i32) -> i32 {
    %c0_i32 = arith.constant 0 : i32
    %c0_i32_0 = arith.constant 0 : i32
    return %c0_i32 : i32
  }
  func.func @transform_2(%arg0: i32) -> (i32, i32) {
    %c0_i32 = arith.constant 0 : i32
    %c0_i32_0 = arith.constant 0 : i32
    return %arg0, %c0_i32 : i32, i32
  }
  func.func @transform_3(%arg0: i32) -> (i32, i32) {
    %c0_i32 = arith.constant 0 : i32
    %c0_i32_0 = arith.constant 0 : i32
    return %arg0, %c0_i32 : i32, i32
  }
}

</mosaic_0001>

<llo_original>
// kernel: tpu_custom_call.1
$region0: #{tpu_custom_call.1}
  #allocation0 [shape = 'u32[]', space=smem, size = 0x4, offset = 0x4, fixed_abs, tag = 'smem constant byte address 0x4 - core index']
  #allocation1 [shape = 'u32[144,128]{1,0:T(1,128)}', space=vmem, size = 0x12000, scoped, tag = 'internal scratch']
  #allocation2 [shape = 'f32[1]{0:T(128)S(6)}', space=smem, size = 0x200, scoped, tag = 'scoped memory for tpu_custom_call.1']
  #allocation3 [shape = 'f32[1]{0:T(128)S(6)}', space=smem, size = 0x200, scoped, tag = 'scoped memory for tpu_custom_call.1']
  %s0 = inlined_call_operand.<no memory space> [shape: f32[1], index: 0, kind: input, shape index: {}]
  %s1 = inlined_call_operand.<no memory space> [shape: f32[1], index: 1, kind: input, shape index: {}]
  %s2 = inlined_call_operand.hbm [shape: f32[16,128], index: 2, kind: input, shape index: {}]
  %s3 = inlined_call_operand.hbm [shape: f32[16,128], index: 3, kind: output, shape index: {}]
  %s4 = sld [smem:[#allocation0]]
  $region49: #{tpu_custom_call.1} parent=0
    _
  %s6 = ssub.s32 1, %s4
  %s7 = scalar_select 0, %s6, %s4
  %8 = sst [smem:[#allocation2]] %s0
  %9 = sst [smem:[#allocation3]] %s1
  $region1: #{tpu_custom_call.1} parent=0
    #allocation4 [shape = 'u8[8192]{0}', space=vmem, size = 0x2000, scoped, tag = 'input window, operand 2']
    #allocation5 [shape = 's32[2]{0}', space=sflag, size = 0x8, scoped, tag = 'scoped memory for tpu_custom_call.1']
    #allocation6 [shape = 's32[2]{0}', space=sflag, size = 0x8, scoped, tag = 'scoped memory for tpu_custom_call.1']
    #allocation7 [shape = 'u8[8192]{0}', space=vmem, size = 0x2000, scoped, tag = 'output window, operand 0']
    %10 = vsyncpa [#allocation5], 0
    %s11 = scalar_lea.sflag [#allocation5], 1
    %12 = vsyncpa %s11, 0
    %13 = vsyncpa [#allocation6], 0
    %s14 = scalar_lea.sflag [#allocation6], 1
    %15 = vsyncpa %s14, 0
    loop: start=0, step=1, limit=4
    $region2: #{tpu_custom_call.1} parent=1 // loop_pre_header
      _
    $region3: #{tpu_custom_call.1} parent=1 // loop_header
      %s17 = sphi 0, %s21
      %p18 = scmp.ge.s32.totalorder %s17, 4
      %s25 = sphi 0, %s25
      %s27 = sphi 0, %s25
      %s28 = sphi 0, %s27
      %s42 = sphi 0, %s28
      %s46 = sphi 0, %s46
      %s48 = sphi 0, %s46
      %s49 = sphi 0, %s48
      %s63 = sphi 0, %s49
      %s69 = sphi 0, %s71
      %s72 = sphi 0, %s69
      %s73 = sphi 0, %s72
      %s89 = sphi 0, %s73
      %s95 = sphi 0, %s97
      %s98 = sphi 0, %s95
      %s99 = sphi 0, %s98
      %s115 = sphi 0, %s99
    $region4: #{tpu_custom_call.1} parent=1 // loop_header_branch
      %20 = sbr.rel (%p18) target = $region8
    $region5: #{tpu_custom_call.1} parent=1 // loop_body
      %s22 = ssub.s32 %s17, 1
      %s23 = ssub.s32 %s17, 2
      %s24 = sadd.s32 %s17, 1
      %s26 = sadd.s32 %s25, 1
      %p29 = scmp.eq.s32.totalorder %s17, 1
      %p30 = scmp.ne.s32.totalorder %s25, %s27
      %p31 = scmp.eq.s32.totalorder %s17, 0
      %p32 = por %p30, %p31
      %p33 = scmp.ne.s32.totalorder %s25, %s27
      %p34 = scmp.eq.s32.totalorder %s22, 1
      %p35 = por %p33, %p34
      %p36 = scmp.ne.s32.totalorder %s27, %s28
      %p37 = scmp.eq.s32.totalorder %s22, 0
      %p38 = por %p36, %p37
      %p39 = scmp.ne.s32.totalorder %s27, %s28
      %p40 = scmp.eq.s32.totalorder %s23, 1
      %p41 = por %p39, %p40
      %p43 = scmp.ne.s32.totalorder %s28, %s42
      %p44 = scmp.eq.s32.totalorder %s23, 0
      %p45 = por %p43, %p44
      %s47 = sadd.s32 %s46, 1
      %p50 = scmp.eq.s32.totalorder %s17, 1
      %p51 = scmp.ne.s32.totalorder %s46, %s48
      %p52 = scmp.eq.s32.totalorder %s17, 0
      %p53 = por %p51, %p52
      %p54 = scmp.ne.s32.totalorder %s46, %s48
      %p55 = scmp.eq.s32.totalorder %s22, 1
      %p56 = por %p54, %p55
      %p57 = scmp.ne.s32.totalorder %s48, %s49
      %p58 = scmp.eq.s32.totalorder %s22, 0
      %p59 = por %p57, %p58
      %p60 = scmp.ne.s32.totalorder %s48, %s49
      %p61 = scmp.eq.s32.totalorder %s23, 1
      %p62 = por %p60, %p61
      %p64 = scmp.ne.s32.totalorder %s49, %s63
      %p65 = scmp.eq.s32.totalorder %s23, 0
      %p66 = por %p64, %p65
      %s67 = ssub.s32 %s17, %s24
      %p68 = scmp.eq.s32.totalorder %s67, 0
      %s70 = sadd.s32 %s69, 1
      %s71 = scalar_select %p68, %s69, %s70
      %p74 = pneg %p68
      %p75 = scmp.eq.s32.totalorder %s17, 1
      %p76 = por %p74, %p75
      %p77 = scmp.ne.s32.totalorder %s69, %s72
      %p78 = scmp.eq.s32.totalorder %s17, 0
      %p79 = por %p77, %p78
      %p80 = scmp.ne.s32.totalorder %s69, %s72
      %p81 = scmp.eq.s32.totalorder %s22, 1
      %p82 = por %p80, %p81
      %p83 = scmp.ne.s32.totalorder %s72, %s73
      %p84 = scmp.eq.s32.totalorder %s22, 0
      %p85 = por %p83, %p84
      %p86 = scmp.ne.s32.totalorder %s72, %s73
      %p87 = scmp.eq.s32.totalorder %s23, 1
      %p88 = por %p86, %p87
      %p90 = scmp.ne.s32.totalorder %s73, %s89
      %p91 = scmp.eq.s32.totalorder %s23, 0
      %p92 = por %p90, %p91
      %s93 = ssub.s32 %s17, %s24
      %p94 = scmp.eq.s32.totalorder %s93, 0
      %s96 = sadd.s32 %s95, 1
      %s97 = scalar_select %p94, %s95, %s96
      %p100 = pneg %p94
      %p101 = scmp.eq.s32.totalorder %s17, 1
      %p102 = por %p100, %p101
      %p103 = scmp.ne.s32.totalorder %s95, %s98
      %p104 = scmp.eq.s32.totalorder %s17, 0
      %p105 = por %p103, %p104
      %p106 = scmp.ne.s32.totalorder %s95, %s98
      %p107 = scmp.eq.s32.totalorder %s22, 1
      %p108 = por %p106, %p107
      %p109 = scmp.ne.s32.totalorder %s98, %s99
      %p110 = scmp.eq.s32.totalorder %s22, 0
      %p111 = por %p109, %p110
      %p112 = scmp.ne.s32.totalorder %s98, %s99
      %p113 = scmp.eq.s32.totalorder %s23, 1
      %p114 = por %p112, %p113
      %p116 = scmp.ne.s32.totalorder %s99, %s115
      %p117 = scmp.eq.s32.totalorder %s23, 0
      %p118 = por %p116, %p117
      %p119 = scmp.le.s32.totalorder 1, %s17
      %p120 = scmp.lt.s32.totalorder %s17, 3
      %p121 = pnand %p119, %p120
      %p122 = pneg %p121
      // Predicated region
      $region9: #{tpu_custom_call.1} parent=5 // pred_check
        _
      $region10: #{tpu_custom_call.1} parent=5 // pred_check_branch
        %124 = sbr.rel (%p121) target = $region12
      $region11: #{tpu_custom_call.1} parent=5 // pred_region
        %s125 = ssub.s32 %s17, 1
        // Predicated region
        $region13: #{tpu_custom_call.1} parent=11 // pred_check
          %p126 = pneg %p38
        $region14: #{tpu_custom_call.1} parent=11 // pred_check_branch
          %128 = sbr.rel (%p126) target = $region16
        $region15: #{tpu_custom_call.1} parent=11 // pred_region
          _
        $region16: #{tpu_custom_call.1} parent=11 // pred_fallthru
          _
        // Predicated region
        $region17: #{tpu_custom_call.1} parent=11 // pred_check
          %p129 = pneg %p59
        $region18: #{tpu_custom_call.1} parent=11 // pred_check_branch
          %131 = sbr.rel (%p129) target = $region20
        $region19: #{tpu_custom_call.1} parent=11 // pred_region
          _
        $region20: #{tpu_custom_call.1} parent=11 // pred_fallthru
          _
      $region12: #{tpu_custom_call.1} parent=5 // pred_fallthru
        _
      %p132 = scmp.lt.s32.totalorder %s17, 2
      // Predicated region
      $region21: #{tpu_custom_call.1} parent=5 // pred_check
        %p133 = pneg %p132
      $region22: #{tpu_custom_call.1} parent=5 // pred_check_branch
        %135 = sbr.rel (%p133) target = $region24
      $region23: #{tpu_custom_call.1} parent=5 // pred_region
        // Predicated region
        $region25: #{tpu_custom_call.1} parent=23 // pred_check
          %p136 = pneg %p79
        $region26: #{tpu_custom_call.1} parent=23 // pred_check_branch
          %138 = sbr.rel (%p136) target = $region28
        $region27: #{tpu_custom_call.1} parent=23 // pred_region
          %s139 = sand.u32 %s69, 1
          %s140 = scalar_lea.sflag [#allocation5], %s139
          %s141 = sand.u32 %s69, 1
          %s142 = smul.addr %s141, 8
          %s143 = scalar_lea.vmem [#allocation4], %s142
          %s145 = ssub.s32 128, 128
          %146 = vsyncadd %s140, %s145
          %s147 = smul.addr %s17, 128
          %s148 = scalar_lea.hbm %s2, %s147
          %s150 = sshll.u32 %s143, 4
          %s151 = int_to_ptr.vmem [resolvable:$true] %s150
          %153 = dma.hbm_to_vmem [thread:$0]  %s148, 128, %s151, %s140
        $region28: #{tpu_custom_call.1} parent=23 // pred_fallthru
          _
      $region24: #{tpu_custom_call.1} parent=5 // pred_fallthru
        _
      %p154 = scmp.le.s32.totalorder 1, %s17
      %p155 = scmp.lt.s32.totalorder %s17, 3
      %p156 = pnand %p154, %p155
      %p157 = pneg %p156
      // Predicated region
      $region29: #{tpu_custom_call.1} parent=5 // pred_check
        _
      $region30: #{tpu_custom_call.1} parent=5 // pred_check_branch
        %159 = sbr.rel (%p156) target = $region32
      $region31: #{tpu_custom_call.1} parent=5 // pred_region
        %s160 = ssub.s32 %s17, 1
        %s161 = sand.u32 %s72, 1
        %s162 = scalar_lea.sflag [#allocation5], %s161
        %s163 = sand.u32 %s72, 1
        %s164 = smul.addr %s163, 8
        %s165 = scalar_lea.vmem [#allocation4], %s164
        // Predicated region
        $region33: #{tpu_custom_call.1} parent=31 // pred_check
          %p166 = pneg %p85
        $region34: #{tpu_custom_call.1} parent=31 // pred_check_branch
          %168 = sbr.rel (%p166) target = $region36
        $region35: #{tpu_custom_call.1} parent=31 // pred_region
          %169 = dma.done %s162, 128
        $region36: #{tpu_custom_call.1} parent=31 // pred_fallthru
          _
        %p170 = pneg %p38
        %p171 = pneg %p35
        %p172 = pneg %p59
        %p173 = pneg %p56
        %s174 = sand.u32 %s72, 1
        %s175 = scalar_lea.sflag [#allocation5], %s174
        %s176 = sand.u32 %s72, 1
        %s177 = smul.addr %s176, 8
        %s178 = scalar_lea.vmem [#allocation4], %s177
        %p179 = pneg %p85
        %p180 = pneg %p82
        %p181 = pneg %p111
        %p182 = pneg %p108
        %s183 = sand.u32 %s98, 1
        %s184 = scalar_lea.sflag [#allocation6], %s183
        %s185 = sand.u32 %s98, 1
        %s186 = smul.addr %s185, 8
        %s187 = scalar_lea.vmem [#allocation7], %s186
        %s188 = sld [smem:[#allocation2]]
        %s189 = sld [smem:[#allocation3]]
        %s190 = smul.f32 %s188, 100.0
        %s191 = scvt.f32.s32 %s190
        %s192 = scvt.s32.f32 %s191
        %s193 = sand.u32 2147483647, %s192
        %s194 = sand.u32 %s190, 2147483648
        %s195 = sor.u32 %s193, %s194
        %s196 = sand.u32 2147483647, %s190
        %p197 = scmp.lt.f32.partialorder %s196, 2.1474836e+09
        %s198 = scalar_select %p197, %s195, %s190
        %v199 = vrcp.pop 100.0
        %s200 = vtos %v199
        %s201 = smul.f32 %s198, %s200
        %s202 = smul.f32 %s189, 10.0
        %s203 = scvt.f32.s32 %s202
        %s204 = scvt.s32.f32 %s203
        %s205 = sand.u32 2147483647, %s204
        %s206 = sand.u32 %s202, 2147483648
        %s207 = sor.u32 %s205, %s206
        %s208 = sand.u32 2147483647, %s202
        %p209 = scmp.lt.f32.partialorder %s208, 2.1474836e+09
        %s210 = scalar_select %p209, %s207, %s202
        %v211 = vrcp.pop 10.0
        %s212 = vtos %v211
        %s213 = smul.f32 %s210, %s212
        %v214 = vstv %s213
        %v215 = vrcp.pop %v214
        %s216 = vtos %v215
        %v217 = vld [vmem:[%s165] sm:$0xff]
        %v218 = vstv %s201
        %v219 = vsub.f32 %v217, %v218
        %v220 = vmul.f32 %v219, 1.442695
        %v221 = vpow.pop %v220
        %v222 = vstv %s216
        %v223 = vmul.f32 %v221, %v222
        %224 = vst [vmem:[%s187] sm:$0xff] %v223
        %s225 = sand.u32 %s98, 1
        %s226 = scalar_lea.sflag [#allocation6], %s225
        %s227 = sand.u32 %s98, 1
        %s228 = smul.addr %s227, 8
        %s229 = scalar_lea.vmem [#allocation7], %s228
        // Predicated region
        $region37: #{tpu_custom_call.1} parent=31 // pred_check
          %p230 = pneg %p108
        $region38: #{tpu_custom_call.1} parent=31 // pred_check_branch
          %232 = sbr.rel (%p230) target = $region40
        $region39: #{tpu_custom_call.1} parent=31 // pred_region
          %s234 = ssub.s32 128, 128
          %235 = vsyncadd %s226, %s234
          %s236 = smul.addr %s22, 128
          %s237 = scalar_lea.hbm %s3, %s236
          %s239 = sshll.u32 %s229, 4
          %s240 = int_to_ptr.vmem [resolvable:$true] %s239
          %242 = dma.vmem_to_hbm [thread:$0]  %s240, 128, %s237, %s226
        $region40: #{tpu_custom_call.1} parent=31 // pred_fallthru
          _
      $region32: #{tpu_custom_call.1} parent=5 // pred_fallthru
        _
      %p243 = scmp.le.s32.totalorder 2, %s17
      // Predicated region
      $region41: #{tpu_custom_call.1} parent=5 // pred_check
        %p244 = pneg %p243
      $region42: #{tpu_custom_call.1} parent=5 // pred_check_branch
        %246 = sbr.rel (%p244) target = $region44
      $region43: #{tpu_custom_call.1} parent=5 // pred_region
        %s247 = ssub.s32 %s17, 2
        // Predicated region
        $region45: #{tpu_custom_call.1} parent=43 // pred_check
          %p248 = pneg %p114
        $region46: #{tpu_custom_call.1} parent=43 // pred_check_branch
          %250 = sbr.rel (%p248) target = $region48
        $region47: #{tpu_custom_call.1} parent=43 // pred_region
          %s251 = sand.u32 %s99, 1
          %s252 = scalar_lea.sflag [#allocation6], %s251
          %s253 = sand.u32 %s99, 1
          %s254 = smul.addr %s253, 8
          %s255 = scalar_lea.vmem [#allocation7], %s254
          %256 = dma.done %s252, 128
        $region48: #{tpu_custom_call.1} parent=43 // pred_fallthru
          _
      $region44: #{tpu_custom_call.1} parent=5 // pred_fallthru
        _
    $region6: #{tpu_custom_call.1} parent=1 // loop_footer
      %s21 = sadd.s32 1, %s17
    $region7: #{tpu_custom_call.1} parent=1 // loop_footer_branch
      %16 = sbr.rel target = $region3
    $region8: #{tpu_custom_call.1} parent=1 // loop_exit
      _
    %257 = vsyncpa [#allocation5], 1
    %s258 = scalar_lea.sflag [#allocation5], 1
    %259 = vsyncpa %s258, 1
    %260 = vsyncpa [#allocation6], 1
    %s261 = scalar_lea.sflag [#allocation6], 1
    %262 = vsyncpa %s261, 1

</llo_original>
